<compile_context>
chip_gen: v5e
topology: v5e:2x2
jax: 0.10.0
libtpu: 0.0.40
codegen_flags: <defaults>
</compile_context>

<pallas_src>
import functools

import jax
import jax.numpy as jnp
from jax.experimental import pallas as pl
from jax.experimental.pallas import tpu as pltpu


def _round_up(x: int, m: int) -> int:
    return (x + m - 1) // m * m


# ----------------------------- Pallas kernel ------------------------------- #

def _channel_mix_kernel(w_ref, b_ref, x_ref, o_ref, *, n, c_in, c_out):
    """out[i*c_out + o, :] = sum_c w[o, c] * x[i*c_in + c, :] + b[o].

    w_ref: (C_out, C_in)   f32 in SMEM (scalar reads, broadcast on the VPU)
    b_ref: (C_out,)        f32 in SMEM
    x_ref: (N*C_in,  T)    f32 in VMEM   (T = lane tile, multiple of 128)
    o_ref: (N*C_out, T)    f32 in VMEM
    """
    for i in range(n):                                 # static unroll (tiny N)
        for o in range(c_out):                         # static unroll (tiny C)
            r_in = i * c_in
            acc = x_ref[r_in:r_in + 1, :] * w_ref[o, 0] + b_ref[o]   # (1, T)
            for c in range(1, c_in):
                acc = acc + x_ref[r_in + c:r_in + c + 1, :] * w_ref[o, c]
            r_out = i * c_out + o
            o_ref[r_out:r_out + 1, :] = acc.astype(o_ref.dtype)


def _pick_tile_hw(hw_pad: int, bytes_per_lane: int, max_tile_bytes: int) -> int:
    """Largest lane tile (multiple of 128) that divides hw_pad, fits the VMEM
    budget (accounting for double-buffering of both streams), and leaves >= 2
    grid steps when possible (megacore sharding on v7x)."""
    units = hw_pad // 128
    budget_units = max(1, (max_tile_bytes // 2) // (bytes_per_lane * 128))
    cap = units if units < 2 else units // 2           # >= 2 steps if possible
    cap = max(1, min(cap, budget_units))
    for d in range(cap, 0, -1):
        if units % d == 0:
            return d * 128
    return 128


def channel_mix_pallas(x2: jnp.ndarray, w: jnp.ndarray, b: jnp.ndarray,
                       n: int, *, max_tile_bytes: int = 8 << 20) -> jnp.ndarray:
    """x2: (N*C_in, HW) f32; w: (C_out, C_in) f32; b: (C_out,) f32."""
    rows_in, hw = x2.shape
    c_out, c_in = w.shape
    assert rows_in == n * c_in
    rows_out = n * c_out

    # Lane alignment only (no full-tile padding): pad HW to a multiple of 128.
    hw_pad = _round_up(hw, 128)
    if hw_pad != hw:
        x2 = jnp.pad(x2, ((0, 0), (0, hw_pad - hw)))

    bytes_per_lane = (rows_in + rows_out) * 4
    tile_hw = _pick_tile_hw(hw_pad, bytes_per_lane, max_tile_bytes)
    grid = (hw_pad // tile_hw,)

    cost = pl.CostEstimate(
        flops=2 * n * c_out * c_in * hw_pad,
        transcendentals=0,
        bytes_accessed=(rows_in + rows_out) * hw_pad * 4
                       + (w.size + b.size) * 4,
    )

    out = pl.pallas_call(
        functools.partial(_channel_mix_kernel, n=n, c_in=c_in, c_out=c_out),
        out_shape=jax.ShapeDtypeStruct((rows_out, hw_pad), x2.dtype),
        grid_spec=pltpu.PrefetchScalarGridSpec(
            num_scalar_prefetch=0,
            grid=grid,
            in_specs=[
                # Tiny weight/bias: whole arrays in SMEM (no padded VMEM slab,
                # no extra double-buffered DMA stream).
                pl.BlockSpec(memory_space=pltpu.MemorySpace.SMEM),
                pl.BlockSpec(memory_space=pltpu.MemorySpace.SMEM),
                pl.BlockSpec((rows_in, tile_hw), lambda j: (0, j)),
            ],
            out_specs=pl.BlockSpec((rows_out, tile_hw), lambda j: (0, j)),
        ),
        compiler_params=pltpu.CompilerParams(
            dimension_semantics=("parallel",),
            vmem_limit_bytes=32 * 1024 * 1024,   # valid on v5e/v6e/v7x
        ),
        cost_estimate=cost,
    )(w, b, x2)

    if hw_pad != hw:
        out = out[:, :hw]
    return out


# ------------------------- Inner synthetic "model" ------------------------- #

class PointwiseConvModel:
    """Synthetic stand-in for the wrapped `model: Module` (Conv2d(C, C, 1))."""

    def __init__(self, channels: int, key: jax.Array):
        kw, kb = jax.random.split(key)
        scale = 1.0 / jnp.sqrt(jnp.float32(channels))
        self.weight = (jax.random.normal(kw, (channels, channels),
                                         dtype=jnp.float32) * scale)
        self.bias = (jax.random.normal(kb, (channels,),
                                       dtype=jnp.float32) * scale)

    def __call__(self, x_nchw: jnp.ndarray) -> jnp.ndarray:
        n, c, h, w = x_nchw.shape
        # Free reshapes (contiguous dims only, no transpose): NCHW -> (N*C, HW)
        x2 = x_nchw.reshape(n * c, h * w)
        out2 = channel_mix_pallas(x2, self.weight, self.bias, n)
        return out2.reshape(n, self.weight.shape[0], h, w)


# ------------------------------- FlowModel --------------------------------- #

class FlowModel:
    """Base-class wrapper for flow models (mirrors the PyTorch FlowModel)."""

    def __init__(self, model):
        self.model = model

    def sample(self, z0=None, num_steps=1000):
        # TODO(synk): abstract in the reference (raises NotImplementedError).
        raise NotImplementedError

    def forward(self, data: jnp.ndarray, noise: jnp.ndarray | None = None):
        # Base-class forward is abstract; concrete behaviour here is the
        # wrapped model applied to `data` (noise handling is subclass-defined).
        del noise
        return self.model(data)

    __call__ = forward


# --------------------------------- main ------------------------------------ #

if __name__ == "__main__":
    key = jax.random.PRNGKey(0)
    k_data, k_model = jax.random.split(key)

    N, C, H, W = 2, 4, 16, 16          # HW = 256 -> two 128-lane tiles
    data = jax.random.normal(k_data, (N, C, H, W), dtype=jnp.float32)

    flow = FlowModel(PointwiseConvModel(C, k_model))
    out = flow(data)
    out = jax.block_until_ready(out)

    # Cross-check against plain-JAX reference (1x1 conv).
    ref = jnp.einsum("oc,nchw->nohw", flow.model.weight, data) \
          + flow.model.bias[None, :, None, None]
    assert out.shape == (N, C, H, W)
    assert jnp.allclose(out, ref, atol=1e-5, rtol=1e-5)

    print("KERNEL_OK")
</pallas_src>

<mosaic_0001>
module attributes {stable_mosaic.version = 11 : i64} {
  func.func @_channel_mix_kernel(%arg0: i32, %arg1: memref<4x4xf32, #tpu.memory_space<smem>>, %arg2: memref<4xf32, #tpu.memory_space<smem>>, %arg3: memref<8x128xf32, #tpu.memory_space<vmem>>, %arg4: memref<8x128xf32, #tpu.memory_space<vmem>>) attributes {dimension_semantics = [#tpu.dimension_semantics<parallel>], iteration_bounds = array<i64: 2>, scalar_prefetch = 0 : i64, scratch_operands = 0 : i64, tpu.core_type = #tpu.core_type<tc>, window_params = [{transform_indices = @transform_0, window_bounds = array<i64: 4, 4>}, {transform_indices = @transform_1, window_bounds = array<i64: 4>}, {transform_indices = @transform_2, window_bounds = array<i64: 8, 128>}, {transform_indices = @transform_3, window_bounds = array<i64: 8, 128>}]} {
    %c0 = arith.constant 0 : index
    %c0_0 = arith.constant 0 : index
    %0 = vector.load %arg3[%c0, %c0_0] : memref<8x128xf32, #tpu.memory_space<vmem>>, vector<1x128xf32>
    %c0_1 = arith.constant 0 : index
    %c0_2 = arith.constant 0 : index
    %1 = memref.load %arg1[%c0_1, %c0_2] : memref<4x4xf32, #tpu.memory_space<smem>>
    %2 = vector.broadcast %1 : f32 to vector<1x128xf32>
    %3 = arith.mulf %0, %2 : vector<1x128xf32>
    %c0_3 = arith.constant 0 : index
    %4 = memref.load %arg2[%c0_3] : memref<4xf32, #tpu.memory_space<smem>>
    %5 = vector.broadcast %4 : f32 to vector<1x128xf32>
    %6 = arith.addf %3, %5 : vector<1x128xf32>
    %c1 = arith.constant 1 : index
    %c0_4 = arith.constant 0 : index
    %7 = vector.load %arg3[%c1, %c0_4] : memref<8x128xf32, #tpu.memory_space<vmem>>, vector<1x128xf32>
    %c0_5 = arith.constant 0 : index
    %c1_6 = arith.constant 1 : index
    %8 = memref.load %arg1[%c0_5, %c1_6] : memref<4x4xf32, #tpu.memory_space<smem>>
    %9 = vector.broadcast %8 : f32 to vector<1x128xf32>
    %10 = arith.mulf %7, %9 : vector<1x128xf32>
    %11 = arith.addf %6, %10 : vector<1x128xf32>
    %c2 = arith.constant 2 : index
    %c0_7 = arith.constant 0 : index
    %12 = vector.load %arg3[%c2, %c0_7] : memref<8x128xf32, #tpu.memory_space<vmem>>, vector<1x128xf32>
    %c0_8 = arith.constant 0 : index
    %c2_9 = arith.constant 2 : index
    %13 = memref.load %arg1[%c0_8, %c2_9] : memref<4x4xf32, #tpu.memory_space<smem>>
    %14 = vector.broadcast %13 : f32 to vector<1x128xf32>
    %15 = arith.mulf %12, %14 : vector<1x128xf32>
    %16 = arith.addf %11, %15 : vector<1x128xf32>
    %c3 = arith.constant 3 : index
    %c0_10 = arith.constant 0 : index
    %17 = vector.load %arg3[%c3, %c0_10] : memref<8x128xf32, #tpu.memory_space<vmem>>, vector<1x128xf32>
    %c0_11 = arith.constant 0 : index
    %c3_12 = arith.constant 3 : index
    %18 = memref.load %arg1[%c0_11, %c3_12] : memref<4x4xf32, #tpu.memory_space<smem>>
    %19 = vector.broadcast %18 : f32 to vector<1x128xf32>
    %20 = arith.mulf %17, %19 : vector<1x128xf32>
    %21 = arith.addf %16, %20 : vector<1x128xf32>
    %c0_13 = arith.constant 0 : index
    %c0_14 = arith.constant 0 : index
    %22 = vector.load %arg4[%c0_13, %c0_14] : memref<8x128xf32, #tpu.memory_space<vmem>>, vector<1x128xf32>
    tpu.vector_store %arg4[%c0_13, %c0_14], %21 {strides = array<i32>} : memref<8x128xf32, #tpu.memory_space<vmem>>, vector<1x128xf32>,
    %c0_15 = arith.constant 0 : index
    %c0_16 = arith.constant 0 : index
    %23 = vector.load %arg3[%c0_15, %c0_16] : memref<8x128xf32, #tpu.memory_space<vmem>>, vector<1x128xf32>
    %c1_17 = arith.constant 1 : index
    %c0_18 = arith.constant 0 : index
    %24 = memref.load %arg1[%c1_17, %c0_18] : memref<4x4xf32, #tpu.memory_space<smem>>
    %25 = vector.broadcast %24 : f32 to vector<1x128xf32>
    %26 = arith.mulf %23, %25 : vector<1x128xf32>
    %c1_19 = arith.constant 1 : index
    %27 = memref.load %arg2[%c1_19] : memref<4xf32, #tpu.memory_space<smem>>
    %28 = vector.broadcast %27 : f32 to vector<1x128xf32>
    %29 = arith.addf %26, %28 : vector<1x128xf32>
    %c1_20 = arith.constant 1 : index
    %c0_21 = arith.constant 0 : index
    %30 = vector.load %arg3[%c1_20, %c0_21] : memref<8x128xf32, #tpu.memory_space<vmem>>, vector<1x128xf32>
    %c1_22 = arith.constant 1 : index
    %c1_23 = arith.constant 1 : index
    %31 = memref.load %arg1[%c1_22, %c1_23] : memref<4x4xf32, #tpu.memory_space<smem>>
    %32 = vector.broadcast %31 : f32 to vector<1x128xf32>
    %33 = arith.mulf %30, %32 : vector<1x128xf32>
    %34 = arith.addf %29, %33 : vector<1x128xf32>
    %c2_24 = arith.constant 2 : index
    %c0_25 = arith.constant 0 : index
    %35 = vector.load %arg3[%c2_24, %c0_25] : memref<8x128xf32, #tpu.memory_space<vmem>>, vector<1x128xf32>
    %c1_26 = arith.constant 1 : index
    %c2_27 = arith.constant 2 : index
    %36 = memref.load %arg1[%c1_26, %c2_27] : memref<4x4xf32, #tpu.memory_space<smem>>
    %37 = vector.broadcast %36 : f32 to vector<1x128xf32>
    %38 = arith.mulf %35, %37 : vector<1x128xf32>
    %39 = arith.addf %34, %38 : vector<1x128xf32>
    %c3_28 = arith.constant 3 : index
    %c0_29 = arith.constant 0 : index
    %40 = vector.load %arg3[%c3_28, %c0_29] : memref<8x128xf32, #tpu.memory_space<vmem>>, vector<1x128xf32>
    %c1_30 = arith.constant 1 : index
    %c3_31 = arith.constant 3 : index
    %41 = memref.load %arg1[%c1_30, %c3_31] : memref<4x4xf32, #tpu.memory_space<smem>>
    %42 = vector.broadcast %41 : f32 to vector<1x128xf32>
    %43 = arith.mulf %40, %42 : vector<1x128xf32>
    %44 = arith.addf %39, %43 : vector<1x128xf32>
    %c1_32 = arith.constant 1 : index
    %c0_33 = arith.constant 0 : index
    %45 = vector.load %arg4[%c1_32, %c0_33] : memref<8x128xf32, #tpu.memory_space<vmem>>, vector<1x128xf32>
    tpu.vector_store %arg4[%c1_32, %c0_33], %44 {strides = array<i32>} : memref<8x128xf32, #tpu.memory_space<vmem>>, vector<1x128xf32>,
    %c0_34 = arith.constant 0 : index
    %c0_35 = arith.constant 0 : index
    %46 = vector.load %arg3[%c0_34, %c0_35] : memref<8x128xf32, #tpu.memory_space<vmem>>, vector<1x128xf32>
    %c2_36 = arith.constant 2 : index
    %c0_37 = arith.constant 0 : index
    %47 = memref.load %arg1[%c2_36, %c0_37] : memref<4x4xf32, #tpu.memory_space<smem>>
    %48 = vector.broadcast %47 : f32 to vector<1x128xf32>
    %49 = arith.mulf %46, %48 : vector<1x128xf32>
    %c2_38 = arith.constant 2 : index
    %50 = memref.load %arg2[%c2_38] : memref<4xf32, #tpu.memory_space<smem>>
    %51 = vector.broadcast %50 : f32 to vector<1x128xf32>
    %52 = arith.addf %49, %51 : vector<1x128xf32>
    %c1_39 = arith.constant 1 : index
    %c0_40 = arith.constant 0 : index
    %53 = vector.load %arg3[%c1_39, %c0_40] : memref<8x128xf32, #tpu.memory_space<vmem>>, vector<1x128xf32>
    %c2_41 = arith.constant 2 : index
    %c1_42 = arith.constant 1 : index
    %54 = memref.load %arg1[%c2_41, %c1_42] : memref<4x4xf32, #tpu.memory_space<smem>>
    %55 = vector.broadcast %54 : f32 to vector<1x128xf32>
    %56 = arith.mulf %53, %55 : vector<1x128xf32>
    %57 = arith.addf %52, %56 : vector<1x128xf32>
    %c2_43 = arith.constant 2 : index
    %c0_44 = arith.constant 0 : index
    %58 = vector.load %arg3[%c2_43, %c0_44] : memref<8x128xf32, #tpu.memory_space<vmem>>, vector<1x128xf32>
    %c2_45 = arith.constant 2 : index
    %c2_46 = arith.constant 2 : index
    %59 = memref.load %arg1[%c2_45, %c2_46] : memref<4x4xf32, #tpu.memory_space<smem>>
    %60 = vector.broadcast %59 : f32 to vector<1x128xf32>
    %61 = arith.mulf %58, %60 : vector<1x128xf32>
    %62 = arith.addf %57, %61 : vector<1x128xf32>
    %c3_47 = arith.constant 3 : index
    %c0_48 = arith.constant 0 : index
    %63 = vector.load %arg3[%c3_47, %c0_48] : memref<8x128xf32, #tpu.memory_space<vmem>>, vector<1x128xf32>
    %c2_49 = arith.constant 2 : index
    %c3_50 = arith.constant 3 : index
    %64 = memref.load %arg1[%c2_49, %c3_50] : memref<4x4xf32, #tpu.memory_space<smem>>
    %65 = vector.broadcast %64 : f32 to vector<1x128xf32>
    %66 = arith.mulf %63, %65 : vector<1x128xf32>
    %67 = arith.addf %62, %66 : vector<1x128xf32>
    %c2_51 = arith.constant 2 : index
    %c0_52 = arith.constant 0 : index
    %68 = vector.load %arg4[%c2_51, %c0_52] : memref<8x128xf32, #tpu.memory_space<vmem>>, vector<1x128xf32>
    tpu.vector_store %arg4[%c2_51, %c0_52], %67 {strides = array<i32>} : memref<8x128xf32, #tpu.memory_space<vmem>>, vector<1x128xf32>,
    %c0_53 = arith.constant 0 : index
    %c0_54 = arith.constant 0 : index
    %69 = vector.load %arg3[%c0_53, %c0_54] : memref<8x128xf32, #tpu.memory_space<vmem>>, vector<1x128xf32>
    %c3_55 = arith.constant 3 : index
    %c0_56 = arith.constant 0 : index
    %70 = memref.load %arg1[%c3_55, %c0_56] : memref<4x4xf32, #tpu.memory_space<smem>>
    %71 = vector.broadcast %70 : f32 to vector<1x128xf32>
    %72 = arith.mulf %69, %71 : vector<1x128xf32>
    %c3_57 = arith.constant 3 : index
    %73 = memref.load %arg2[%c3_57] : memref<4xf32, #tpu.memory_space<smem>>
    %74 = vector.broadcast %73 : f32 to vector<1x128xf32>
    %75 = arith.addf %72, %74 : vector<1x128xf32>
    %c1_58 = arith.constant 1 : index
    %c0_59 = arith.constant 0 : index
    %76 = vector.load %arg3[%c1_58, %c0_59] : memref<8x128xf32, #tpu.memory_space<vmem>>, vector<1x128xf32>
    %c3_60 = arith.constant 3 : index
    %c1_61 = arith.constant 1 : index
    %77 = memref.load %arg1[%c3_60, %c1_61] : memref<4x4xf32, #tpu.memory_space<smem>>
    %78 = vector.broadcast %77 : f32 to vector<1x128xf32>
    %79 = arith.mulf %76, %78 : vector<1x128xf32>
    %80 = arith.addf %75, %79 : vector<1x128xf32>
    %c2_62 = arith.constant 2 : index
    %c0_63 = arith.constant 0 : index
    %81 = vector.load %arg3[%c2_62, %c0_63] : memref<8x128xf32, #tpu.memory_space<vmem>>, vector<1x128xf32>
    %c3_64 = arith.constant 3 : index
    %c2_65 = arith.constant 2 : index
    %82 = memref.load %arg1[%c3_64, %c2_65] : memref<4x4xf32, #tpu.memory_space<smem>>
    %83 = vector.broadcast %82 : f32 to vector<1x128xf32>
    %84 = arith.mulf %81, %83 : vector<1x128xf32>
    %85 = arith.addf %80, %84 : vector<1x128xf32>
    %c3_66 = arith.constant 3 : index
    %c0_67 = arith.constant 0 : index
    %86 = vector.load %arg3[%c3_66, %c0_67] : memref<8x128xf32, #tpu.memory_space<vmem>>, vector<1x128xf32>
    %c3_68 = arith.constant 3 : index
    %c3_69 = arith.constant 3 : index
    %87 = memref.load %arg1[%c3_68, %c3_69] : memref<4x4xf32, #tpu.memory_space<smem>>
    %88 = vector.broadcast %87 : f32 to vector<1x128xf32>
    %89 = arith.mulf %86, %88 : vector<1x128xf32>
    %90 = arith.addf %85, %89 : vector<1x128xf32>
    %c3_70 = arith.constant 3 : index
    %c0_71 = arith.constant 0 : index
    %91 = vector.load %arg4[%c3_70, %c0_71] : memref<8x128xf32, #tpu.memory_space<vmem>>, vector<1x128xf32>
    tpu.vector_store %arg4[%c3_70, %c0_71], %90 {strides = array<i32>} : memref<8x128xf32, #tpu.memory_space<vmem>>, vector<1x128xf32>,
    %c4 = arith.constant 4 : index
    %c0_72 = arith.constant 0 : index
    %92 = vector.load %arg3[%c4, %c0_72] : memref<8x128xf32, #tpu.memory_space<vmem>>, vector<1x128xf32>
    %c0_73 = arith.constant 0 : index
    %c0_74 = arith.constant 0 : index
    %93 = memref.load %arg1[%c0_73, %c0_74] : memref<4x4xf32, #tpu.memory_space<smem>>
    %94 = vector.broadcast %93 : f32 to vector<1x128xf32>
    %95 = arith.mulf %92, %94 : vector<1x128xf32>
    %c0_75 = arith.constant 0 : index
    %96 = memref.load %arg2[%c0_75] : memref<4xf32, #tpu.memory_space<smem>>
    %97 = vector.broadcast %96 : f32 to vector<1x128xf32>
    %98 = arith.addf %95, %97 : vector<1x128xf32>
    %c5 = arith.constant 5 : index
    %c0_76 = arith.constant 0 : index
    %99 = vector.load %arg3[%c5, %c0_76] : memref<8x128xf32, #tpu.memory_space<vmem>>, vector<1x128xf32>
    %c0_77 = arith.constant 0 : index
    %c1_78 = arith.constant 1 : index
    %100 = memref.load %arg1[%c0_77, %c1_78] : memref<4x4xf32, #tpu.memory_space<smem>>
    %101 = vector.broadcast %100 : f32 to vector<1x128xf32>
    %102 = arith.mulf %99, %101 : vector<1x128xf32>
    %103 = arith.addf %98, %102 : vector<1x128xf32>
    %c6 = arith.constant 6 : index
    %c0_79 = arith.constant 0 : index
    %104 = vector.load %arg3[%c6, %c0_79] : memref<8x128xf32, #tpu.memory_space<vmem>>, vector<1x128xf32>
    %c0_80 = arith.constant 0 : index
    %c2_81 = arith.constant 2 : index
    %105 = memref.load %arg1[%c0_80, %c2_81] : memref<4x4xf32, #tpu.memory_space<smem>>
    %106 = vector.broadcast %105 : f32 to vector<1x128xf32>
    %107 = arith.mulf %104, %106 : vector<1x128xf32>
    %108 = arith.addf %103, %107 : vector<1x128xf32>
    %c7 = arith.constant 7 : index
    %c0_82 = arith.constant 0 : index
    %109 = vector.load %arg3[%c7, %c0_82] : memref<8x128xf32, #tpu.memory_space<vmem>>, vector<1x128xf32>
    %c0_83 = arith.constant 0 : index
    %c3_84 = arith.constant 3 : index
    %110 = memref.load %arg1[%c0_83, %c3_84] : memref<4x4xf32, #tpu.memory_space<smem>>
    %111 = vector.broadcast %110 : f32 to vector<1x128xf32>
    %112 = arith.mulf %109, %111 : vector<1x128xf32>
    %113 = arith.addf %108, %112 : vector<1x128xf32>
    %c4_85 = arith.constant 4 : index
    %c0_86 = arith.constant 0 : index
    %114 = vector.load %arg4[%c4_85, %c0_86] : memref<8x128xf32, #tpu.memory_space<vmem>>, vector<1x128xf32>
    tpu.vector_store %arg4[%c4_85, %c0_86], %113 {strides = array<i32>} : memref<8x128xf32, #tpu.memory_space<vmem>>, vector<1x128xf32>,
    %c4_87 = arith.constant 4 : index
    %c0_88 = arith.constant 0 : index
    %115 = vector.load %arg3[%c4_87, %c0_88] : memref<8x128xf32, #tpu.memory_space<vmem>>, vector<1x128xf32>
    %c1_89 = arith.constant 1 : index
    %c0_90 = arith.constant 0 : index
    %116 = memref.load %arg1[%c1_89, %c0_90] : memref<4x4xf32, #tpu.memory_space<smem>>
    %117 = vector.broadcast %116 : f32 to vector<1x128xf32>
    %118 = arith.mulf %115, %117 : vector<1x128xf32>
    %c1_91 = arith.constant 1 : index
    %119 = memref.load %arg2[%c1_91] : memref<4xf32, #tpu.memory_space<smem>>
    %120 = vector.broadcast %119 : f32 to vector<1x128xf32>
    %121 = arith.addf %118, %120 : vector<1x128xf32>
    %c5_92 = arith.constant 5 : index
    %c0_93 = arith.constant 0 : index
    %122 = vector.load %arg3[%c5_92, %c0_93] : memref<8x128xf32, #tpu.memory_space<vmem>>, vector<1x128xf32>
    %c1_94 = arith.constant 1 : index
    %c1_95 = arith.constant 1 : index
    %123 = memref.load %arg1[%c1_94, %c1_95] : memref<4x4xf32, #tpu.memory_space<smem>>
    %124 = vector.broadcast %123 : f32 to vector<1x128xf32>
    %125 = arith.mulf %122, %124 : vector<1x128xf32>
    %126 = arith.addf %121, %125 : vector<1x128xf32>
    %c6_96 = arith.constant 6 : index
    %c0_97 = arith.constant 0 : index
    %127 = vector.load %arg3[%c6_96, %c0_97] : memref<8x128xf32, #tpu.memory_space<vmem>>, vector<1x128xf32>
    %c1_98 = arith.constant 1 : index
    %c2_99 = arith.constant 2 : index
    %128 = memref.load %arg1[%c1_98, %c2_99] : memref<4x4xf32, #tpu.memory_space<smem>>
    %129 = vector.broadcast %128 : f32 to vector<1x128xf32>
    %130 = arith.mulf %127, %129 : vector<1x128xf32>
    %131 = arith.addf %126, %130 : vector<1x128xf32>
    %c7_100 = arith.constant 7 : index
    %c0_101 = arith.constant 0 : index
    %132 = vector.load %arg3[%c7_100, %c0_101] : memref<8x128xf32, #tpu.memory_space<vmem>>, vector<1x128xf32>
    %c1_102 = arith.constant 1 : index
    %c3_103 = arith.constant 3 : index
    %133 = memref.load %arg1[%c1_102, %c3_103] : memref<4x4xf32, #tpu.memory_space<smem>>
    %134 = vector.broadcast %133 : f32 to vector<1x128xf32>
    %135 = arith.mulf %132, %134 : vector<1x128xf32>
    %136 = arith.addf %131, %135 : vector<1x128xf32>
    %c5_104 = arith.constant 5 : index
    %c0_105 = arith.constant 0 : index
    %137 = vector.load %arg4[%c5_104, %c0_105] : memref<8x128xf32, #tpu.memory_space<vmem>>, vector<1x128xf32>
    tpu.vector_store %arg4[%c5_104, %c0_105], %136 {strides = array<i32>} : memref<8x128xf32, #tpu.memory_space<vmem>>, vector<1x128xf32>,
    %c4_106 = arith.constant 4 : index
    %c0_107 = arith.constant 0 : index
    %138 = vector.load %arg3[%c4_106, %c0_107] : memref<8x128xf32, #tpu.memory_space<vmem>>, vector<1x128xf32>
    %c2_108 = arith.constant 2 : index
    %c0_109 = arith.constant 0 : index
    %139 = memref.load %arg1[%c2_108, %c0_109] : memref<4x4xf32, #tpu.memory_space<smem>>
    %140 = vector.broadcast %139 : f32 to vector<1x128xf32>
    %141 = arith.mulf %138, %140 : vector<1x128xf32>
    %c2_110 = arith.constant 2 : index
    %142 = memref.load %arg2[%c2_110] : memref<4xf32, #tpu.memory_space<smem>>
    %143 = vector.broadcast %142 : f32 to vector<1x128xf32>
    %144 = arith.addf %141, %143 : vector<1x128xf32>
    %c5_111 = arith.constant 5 : index
    %c0_112 = arith.constant 0 : index
    %145 = vector.load %arg3[%c5_111, %c0_112] : memref<8x128xf32, #tpu.memory_space<vmem>>, vector<1x128xf32>
    %c2_113 = arith.constant 2 : index
    %c1_114 = arith.constant 1 : index
    %146 = memref.load %arg1[%c2_113, %c1_114] : memref<4x4xf32, #tpu.memory_space<smem>>
    %147 = vector.broadcast %146 : f32 to vector<1x128xf32>
    %148 = arith.mulf %145, %147 : vector<1x128xf32>
    %149 = arith.addf %144, %148 : vector<1x128xf32>
    %c6_115 = arith.constant 6 : index
    %c0_116 = arith.constant 0 : index
    %150 = vector.load %arg3[%c6_115, %c0_116] : memref<8x128xf32, #tpu.memory_space<vmem>>, vector<1x128xf32>
    %c2_117 = arith.constant 2 : index
    %c2_118 = arith.constant 2 : index
    %151 = memref.load %arg1[%c2_117, %c2_118] : memref<4x4xf32, #tpu.memory_space<smem>>
    %152 = vector.broadcast %151 : f32 to vector<1x128xf32>
    %153 = arith.mulf %150, %152 : vector<1x128xf32>
    %154 = arith.addf %149, %153 : vector<1x128xf32>
    %c7_119 = arith.constant 7 : index
    %c0_120 = arith.constant 0 : index
    %155 = vector.load %arg3[%c7_119, %c0_120] : memref<8x128xf32, #tpu.memory_space<vmem>>, vector<1x128xf32>
    %c2_121 = arith.constant 2 : index
    %c3_122 = arith.constant 3 : index
    %156 = memref.load %arg1[%c2_121, %c3_122] : memref<4x4xf32, #tpu.memory_space<smem>>
    %157 = vector.broadcast %156 : f32 to vector<1x128xf32>
    %158 = arith.mulf %155, %157 : vector<1x128xf32>
    %159 = arith.addf %154, %158 : vector<1x128xf32>
    %c6_123 = arith.constant 6 : index
    %c0_124 = arith.constant 0 : index
    %160 = vector.load %arg4[%c6_123, %c0_124] : memref<8x128xf32, #tpu.memory_space<vmem>>, vector<1x128xf32>
    tpu.vector_store %arg4[%c6_123, %c0_124], %159 {strides = array<i32>} : memref<8x128xf32, #tpu.memory_space<vmem>>, vector<1x128xf32>,
    %c4_125 = arith.constant 4 : index
    %c0_126 = arith.constant 0 : index
    %161 = vector.load %arg3[%c4_125, %c0_126] : memref<8x128xf32, #tpu.memory_space<vmem>>, vector<1x128xf32>
    %c3_127 = arith.constant 3 : index
    %c0_128 = arith.constant 0 : index
    %162 = memref.load %arg1[%c3_127, %c0_128] : memref<4x4xf32, #tpu.memory_space<smem>>
    %163 = vector.broadcast %162 : f32 to vector<1x128xf32>
    %164 = arith.mulf %161, %163 : vector<1x128xf32>
    %c3_129 = arith.constant 3 : index
    %165 = memref.load %arg2[%c3_129] : memref<4xf32, #tpu.memory_space<smem>>
    %166 = vector.broadcast %165 : f32 to vector<1x128xf32>
    %167 = arith.addf %164, %166 : vector<1x128xf32>
    %c5_130 = arith.constant 5 : index
    %c0_131 = arith.constant 0 : index
    %168 = vector.load %arg3[%c5_130, %c0_131] : memref<8x128xf32, #tpu.memory_space<vmem>>, vector<1x128xf32>
    %c3_132 = arith.constant 3 : index
    %c1_133 = arith.constant 1 : index
    %169 = memref.load %arg1[%c3_132, %c1_133] : memref<4x4xf32, #tpu.memory_space<smem>>
    %170 = vector.broadcast %169 : f32 to vector<1x128xf32>
    %171 = arith.mulf %168, %170 : vector<1x128xf32>
    %172 = arith.addf %167, %171 : vector<1x128xf32>
    %c6_134 = arith.constant 6 : index
    %c0_135 = arith.constant 0 : index
    %173 = vector.load %arg3[%c6_134, %c0_135] : memref<8x128xf32, #tpu.memory_space<vmem>>, vector<1x128xf32>
    %c3_136 = arith.constant 3 : index
    %c2_137 = arith.constant 2 : index
    %174 = memref.load %arg1[%c3_136, %c2_137] : memref<4x4xf32, #tpu.memory_space<smem>>
    %175 = vector.broadcast %174 : f32 to vector<1x128xf32>
    %176 = arith.mulf %173, %175 : vector<1x128xf32>
    %177 = arith.addf %172, %176 : vector<1x128xf32>
    %c7_138 = arith.constant 7 : index
    %c0_139 = arith.constant 0 : index
    %178 = vector.load %arg3[%c7_138, %c0_139] : memref<8x128xf32, #tpu.memory_space<vmem>>, vector<1x128xf32>
    %c3_140 = arith.constant 3 : index
    %c3_141 = arith.constant 3 : index
    %179 = memref.load %arg1[%c3_140, %c3_141] : memref<4x4xf32, #tpu.memory_space<smem>>
    %180 = vector.broadcast %179 : f32 to vector<1x128xf32>
    %181 = arith.mulf %178, %180 : vector<1x128xf32>
    %182 = arith.addf %177, %181 : vector<1x128xf32>
    %c7_142 = arith.constant 7 : index
    %c0_143 = arith.constant 0 : index
    %183 = vector.load %arg4[%c7_142, %c0_143] : memref<8x128xf32, #tpu.memory_space<vmem>>, vector<1x128xf32>
    tpu.vector_store %arg4[%c7_142, %c0_143], %182 {strides = array<i32>} : memref<8x128xf32, #tpu.memory_space<vmem>>, vector<1x128xf32>,
    return
  }
  func.func @transform_0(%arg0: i32) -> (i32, i32) {
    %c0_i32 = arith.constant 0 : i32
    %c0_i32_0 = arith.constant 0 : i32
    %c0_i32_1 = arith.constant 0 : i32
    return %c0_i32, %c0_i32_0 : i32, i32
  }
  func.func @transform_1(%arg0: i32) -> i32 {
    %c0_i32 = arith.constant 0 : i32
    %c0_i32_0 = arith.constant 0 : i32
    return %c0_i32 : i32
  }
  func.func @transform_2(%arg0: i32) -> (i32, i32) {
    %c0_i32 = arith.constant 0 : i32
    %c0_i32_0 = arith.constant 0 : i32
    return %c0_i32, %arg0 : i32, i32
  }
  func.func @transform_3(%arg0: i32) -> (i32, i32) {
    %c0_i32 = arith.constant 0 : i32
    %c0_i32_0 = arith.constant 0 : i32
    return %c0_i32, %arg0 : i32, i32
  }
}

</mosaic_0001>

<llo_original>
// kernel: tpu_custom_call.1
$region0: #{tpu_custom_call.1}
  #allocation0 [shape = 'u32[]', space=smem, size = 0x4, offset = 0x4, fixed_abs, tag = 'smem constant byte address 0x4 - core index']
  #allocation1 [shape = 'u32[72,128]{1,0:T(1,128)}', space=vmem, size = 0x9000, scoped, tag = 'internal scratch']
  %s0 = inlined_call_operand.hbm [shape: f32[4,4], index: 0, kind: input, shape index: {}]
  %s1 = inlined_call_operand.hbm [shape: f32[4], index: 1, kind: input, shape index: {}]
  %s2 = inlined_call_operand.hbm [shape: f32[8,256], index: 2, kind: input, shape index: {}]
  %s3 = inlined_call_operand.hbm [shape: f32[8,256], index: 3, kind: output, shape index: {}]
  %s4 = sld [smem:[#allocation0]]
  $region57: #{tpu_custom_call.1} parent=0
    _
  %s6 = ssub.s32 1, %s4
  %s7 = scalar_select 0, %s6, %s4
  $region1: #{tpu_custom_call.1} parent=0
    #allocation2 [shape = 'u8[2048]{0}', space=smem, size = 0x800, scoped, tag = 'input window, operand 0, single buffered']
    #allocation3 [shape = 's32[2]{0}', space=sflag, size = 0x8, scoped, tag = 'scoped memory for tpu_custom_call.1']
    #allocation4 [shape = 's32[2]{0}', space=sflag, size = 0x8, scoped, tag = 'scoped memory for tpu_custom_call.1']
    #allocation5 [shape = 's32[2]{0}', space=sflag, size = 0x8, scoped, tag = 'scoped memory for tpu_custom_call.1']
    #allocation6 [shape = 'u8[512]{0}', space=smem, size = 0x200, scoped, tag = 'input window, operand 1, single buffered']
    #allocation7 [shape = 's32[1]{0}', space=sflag, size = 0x4, scoped, tag = 'scoped memory for tpu_custom_call.1']
    #allocation8 [shape = 'u8[8192]{0}', space=vmem, size = 0x2000, scoped, tag = 'input window, operand 2']
    #allocation9 [shape = 'u8[8192]{0}', space=vmem, size = 0x2000, scoped, tag = 'output window, operand 0']
    %8 = vsyncpa [#allocation5], 0
    %9 = vsyncpa [#allocation7], 0
    %10 = vsyncpa [#allocation3], 0
    %s11 = scalar_lea.sflag [#allocation3], 1
    %12 = vsyncpa %s11, 0
    %13 = vsyncpa [#allocation4], 0
    %s14 = scalar_lea.sflag [#allocation4], 1
    %15 = vsyncpa %s14, 0
    loop: start=0, step=1, limit=4
    $region2: #{tpu_custom_call.1} parent=1 // loop_pre_header
      _
    $region3: #{tpu_custom_call.1} parent=1 // loop_header
      %s17 = sphi 0, %s21
      %p18 = scmp.ge.s32.totalorder %s17, 4
      %s25 = sphi 0, %s25
      %s27 = sphi 0, %s25
      %s28 = sphi 0, %s27
      %s42 = sphi 0, %s28
      %s46 = sphi 0, %s46
      %s48 = sphi 0, %s46
      %s49 = sphi 0, %s48
      %s63 = sphi 0, %s49
      %s69 = sphi 0, %s71
      %s72 = sphi 0, %s69
      %s73 = sphi 0, %s72
      %s89 = sphi 0, %s73
      %s95 = sphi 0, %s97
      %s98 = sphi 0, %s95
      %s99 = sphi 0, %s98
      %s115 = sphi 0, %s99
    $region4: #{tpu_custom_call.1} parent=1 // loop_header_branch
      %20 = sbr.rel (%p18) target = $region8
    $region5: #{tpu_custom_call.1} parent=1 // loop_body
      %s22 = ssub.s32 %s17, 1
      %s23 = ssub.s32 %s17, 2
      %s24 = sadd.s32 %s17, 1
      %s26 = sadd.s32 %s25, 1
      %p29 = scmp.eq.s32.totalorder %s17, 1
      %p30 = scmp.ne.s32.totalorder %s25, %s27
      %p31 = scmp.eq.s32.totalorder %s17, 0
      %p32 = por %p30, %p31
      %p33 = scmp.ne.s32.totalorder %s25, %s27
      %p34 = scmp.eq.s32.totalorder %s22, 1
      %p35 = por %p33, %p34
      %p36 = scmp.ne.s32.totalorder %s27, %s28
      %p37 = scmp.eq.s32.totalorder %s22, 0
      %p38 = por %p36, %p37
      %p39 = scmp.ne.s32.totalorder %s27, %s28
      %p40 = scmp.eq.s32.totalorder %s23, 1
      %p41 = por %p39, %p40
      %p43 = scmp.ne.s32.totalorder %s28, %s42
      %p44 = scmp.eq.s32.totalorder %s23, 0
      %p45 = por %p43, %p44
      %s47 = sadd.s32 %s46, 1
      %p50 = scmp.eq.s32.totalorder %s17, 1
      %p51 = scmp.ne.s32.totalorder %s46, %s48
      %p52 = scmp.eq.s32.totalorder %s17, 0
      %p53 = por %p51, %p52
      %p54 = scmp.ne.s32.totalorder %s46, %s48
      %p55 = scmp.eq.s32.totalorder %s22, 1
      %p56 = por %p54, %p55
      %p57 = scmp.ne.s32.totalorder %s48, %s49
      %p58 = scmp.eq.s32.totalorder %s22, 0
      %p59 = por %p57, %p58
      %p60 = scmp.ne.s32.totalorder %s48, %s49
      %p61 = scmp.eq.s32.totalorder %s23, 1
      %p62 = por %p60, %p61
      %p64 = scmp.ne.s32.totalorder %s49, %s63
      %p65 = scmp.eq.s32.totalorder %s23, 0
      %p66 = por %p64, %p65
      %s67 = ssub.s32 %s17, %s24
      %p68 = scmp.eq.s32.totalorder %s67, 0
      %s70 = sadd.s32 %s69, 1
      %s71 = scalar_select %p68, %s69, %s70
      %p74 = pneg %p68
      %p75 = scmp.eq.s32.totalorder %s17, 1
      %p76 = por %p74, %p75
      %p77 = scmp.ne.s32.totalorder %s69, %s72
      %p78 = scmp.eq.s32.totalorder %s17, 0
      %p79 = por %p77, %p78
      %p80 = scmp.ne.s32.totalorder %s69, %s72
      %p81 = scmp.eq.s32.totalorder %s22, 1
      %p82 = por %p80, %p81
      %p83 = scmp.ne.s32.totalorder %s72, %s73
      %p84 = scmp.eq.s32.totalorder %s22, 0
      %p85 = por %p83, %p84
      %p86 = scmp.ne.s32.totalorder %s72, %s73
      %p87 = scmp.eq.s32.totalorder %s23, 1
      %p88 = por %p86, %p87
      %p90 = scmp.ne.s32.totalorder %s73, %s89
      %p91 = scmp.eq.s32.totalorder %s23, 0
      %p92 = por %p90, %p91
      %s93 = ssub.s32 %s17, %s24
      %p94 = scmp.eq.s32.totalorder %s93, 0
      %s96 = sadd.s32 %s95, 1
      %s97 = scalar_select %p94, %s95, %s96
      %p100 = pneg %p94
      %p101 = scmp.eq.s32.totalorder %s17, 1
      %p102 = por %p100, %p101
      %p103 = scmp.ne.s32.totalorder %s95, %s98
      %p104 = scmp.eq.s32.totalorder %s17, 0
      %p105 = por %p103, %p104
      %p106 = scmp.ne.s32.totalorder %s95, %s98
      %p107 = scmp.eq.s32.totalorder %s22, 1
      %p108 = por %p106, %p107
      %p109 = scmp.ne.s32.totalorder %s98, %s99
      %p110 = scmp.eq.s32.totalorder %s22, 0
      %p111 = por %p109, %p110
      %p112 = scmp.ne.s32.totalorder %s98, %s99
      %p113 = scmp.eq.s32.totalorder %s23, 1
      %p114 = por %p112, %p113
      %p116 = scmp.ne.s32.totalorder %s99, %s115
      %p117 = scmp.eq.s32.totalorder %s23, 0
      %p118 = por %p116, %p117
      %p119 = scmp.le.s32.totalorder 1, %s17
      %p120 = scmp.lt.s32.totalorder %s17, 3
      %p121 = pnand %p119, %p120
      %p122 = pneg %p121
      // Predicated region
      $region9: #{tpu_custom_call.1} parent=5 // pred_check
        _
      $region10: #{tpu_custom_call.1} parent=5 // pred_check_branch
        %124 = sbr.rel (%p121) target = $region12
      $region11: #{tpu_custom_call.1} parent=5 // pred_region
        %s125 = ssub.s32 %s17, 1
        // Predicated region
        $region13: #{tpu_custom_call.1} parent=11 // pred_check
          %p126 = pneg %p38
        $region14: #{tpu_custom_call.1} parent=11 // pred_check_branch
          %128 = sbr.rel (%p126) target = $region16
        $region15: #{tpu_custom_call.1} parent=11 // pred_region
          %130 = vsyncadd [#allocation5], 0
          %s132 = sshll.u32 %s0, 4
          %s133 = int_to_ptr.hbm [resolvable:$true] %s132
          %135 = dma.hbm_to_smem %s133, 64, [#allocation2], [#allocation5]
        $region16: #{tpu_custom_call.1} parent=11 // pred_fallthru
          _
        // Predicated region
        $region17: #{tpu_custom_call.1} parent=11 // pred_check
          %p136 = pneg %p59
        $region18: #{tpu_custom_call.1} parent=11 // pred_check_branch
          %138 = sbr.rel (%p136) target = $region20
        $region19: #{tpu_custom_call.1} parent=11 // pred_region
          %140 = vsyncadd [#allocation7], 0
          %s142 = sshll.u32 %s1, 4
          %s143 = int_to_ptr.hbm [resolvable:$true] %s142
          %145 = dma.hbm_to_smem %s143, 16, [#allocation6], [#allocation7]
        $region20: #{tpu_custom_call.1} parent=11 // pred_fallthru
          _
      $region12: #{tpu_custom_call.1} parent=5 // pred_fallthru
        _
      %p146 = scmp.lt.s32.totalorder %s17, 2
      // Predicated region
      $region21: #{tpu_custom_call.1} parent=5 // pred_check
        %p147 = pneg %p146
      $region22: #{tpu_custom_call.1} parent=5 // pred_check_branch
        %149 = sbr.rel (%p147) target = $region24
      $region23: #{tpu_custom_call.1} parent=5 // pred_region
        // Predicated region
        $region25: #{tpu_custom_call.1} parent=23 // pred_check
          %p150 = pneg %p79
        $region26: #{tpu_custom_call.1} parent=23 // pred_check_branch
          %152 = sbr.rel (%p150) target = $region28
        $region27: #{tpu_custom_call.1} parent=23 // pred_region
          %s153 = sand.u32 %s69, 1
          %s154 = scalar_lea.sflag [#allocation3], %s153
          %s155 = sand.u32 %s69, 1
          %s156 = smul.addr %s155, 8
          %s157 = scalar_lea.vmem [#allocation8], %s156
          %159 = vsyncadd %s154, 0
          %s160 = smul.addr %s17, 8
          %s161 = scalar_lea.hbm %s2, %s160
          %s163 = sshll.u32 %s161, 4
          %s164 = int_to_ptr.hbm [resolvable:$true] %s163
          %s165 = sshll.u32 %s157, 4
          %s166 = int_to_ptr.vmem [resolvable:$true] %s165
          %168 = dma.hbm_to_vmem [thread:$0]  %s164, 128, %s166, %s154
        $region28: #{tpu_custom_call.1} parent=23 // pred_fallthru
          _
      $region24: #{tpu_custom_call.1} parent=5 // pred_fallthru
        _
      %p169 = scmp.le.s32.totalorder 1, %s17
      %p170 = scmp.lt.s32.totalorder %s17, 3
      %p171 = pnand %p169, %p170
      %p172 = pneg %p171
      // Predicated region
      $region29: #{tpu_custom_call.1} parent=5 // pred_check
        _
      $region30: #{tpu_custom_call.1} parent=5 // pred_check_branch
        %174 = sbr.rel (%p171) target = $region32
      $region31: #{tpu_custom_call.1} parent=5 // pred_region
        %s175 = ssub.s32 %s17, 1
        // Predicated region
        $region33: #{tpu_custom_call.1} parent=31 // pred_check
          %p176 = pneg %p38
        $region34: #{tpu_custom_call.1} parent=31 // pred_check_branch
          %178 = sbr.rel (%p176) target = $region36
        $region35: #{tpu_custom_call.1} parent=31 // pred_region
          %180 = dma.done [#allocation5], 64
        $region36: #{tpu_custom_call.1} parent=31 // pred_fallthru
          _
        // Predicated region
        $region37: #{tpu_custom_call.1} parent=31 // pred_check
          %p181 = pneg %p59
        $region38: #{tpu_custom_call.1} parent=31 // pred_check_branch
          %183 = sbr.rel (%p181) target = $region40
        $region39: #{tpu_custom_call.1} parent=31 // pred_region
          %185 = dma.done [#allocation7], 16
        $region40: #{tpu_custom_call.1} parent=31 // pred_fallthru
          _
        %s186 = sand.u32 %s72, 1
        %s187 = scalar_lea.sflag [#allocation3], %s186
        %s188 = sand.u32 %s72, 1
        %s189 = smul.addr %s188, 8
        %s190 = scalar_lea.vmem [#allocation8], %s189
        // Predicated region
        $region41: #{tpu_custom_call.1} parent=31 // pred_check
          %p191 = pneg %p85
        $region42: #{tpu_custom_call.1} parent=31 // pred_check_branch
          %193 = sbr.rel (%p191) target = $region44
        $region43: #{tpu_custom_call.1} parent=31 // pred_region
          %195 = dma.done %s187, 128
        $region44: #{tpu_custom_call.1} parent=31 // pred_fallthru
          _
        %196 = sfence
        %p197 = pneg %p38
        %p198 = pneg %p35
        %p199 = pneg %p59
        %p200 = pneg %p56
        %s201 = sand.u32 %s72, 1
        %s202 = scalar_lea.sflag [#allocation3], %s201
        %s203 = sand.u32 %s72, 1
        %s204 = smul.addr %s203, 8
        %s205 = scalar_lea.vmem [#allocation8], %s204
        %p206 = pneg %p85
        %p207 = pneg %p82
        %p208 = pneg %p111
        %p209 = pneg %p108
        %s210 = sand.u32 %s98, 1
        %s211 = scalar_lea.sflag [#allocation4], %s210
        %s212 = sand.u32 %s98, 1
        %s213 = smul.addr %s212, 8
        %s214 = scalar_lea.vmem [#allocation9], %s213
        %v215 = vld [vmem:[%s190] sm:$0x1]
        %s216 = sld [smem:[#allocation2]]
        %v217 = vstv %s216
        %v218 = vmul.f32 %v215, %v217
        %s219 = sld [smem:[#allocation6]]
        %v220 = vstv %s219
        %v221 = vadd.f32 %v218, %v220
        %v222 = vld [vmem:[%s190 + $0x1] sm:$0x1]
        %s223 = sld [smem:[#allocation2 + $0x1]]
        %v224 = vstv %s223
        %v225 = vmul.f32 %v222, %v224
        %v226 = vadd.f32 %v221, %v225
        %v227 = vld [vmem:[%s190 + $0x2] sm:$0x1]
        %s228 = sld [smem:[#allocation2 + $0x2]]
        %v229 = vstv %s228
        %v230 = vmul.f32 %v227, %v229
        %v231 = vadd.f32 %v226, %v230
        %v232 = vld [vmem:[%s190 + $0x3] sm:$0x1]
        %s233 = sld [smem:[#allocation2 + $0x3]]
        %v234 = vstv %s233
        %v235 = vmul.f32 %v232, %v234
        %v236 = vadd.f32 %v231, %v235
        %237 = vst [vmem:[%s214] sm:$0x1] %v236
        %v238 = vld [vmem:[%s190] sm:$0x1]
        %s239 = sld [smem:[#allocation2 + $0x80]]
        %v240 = vstv %s239
        %v241 = vmul.f32 %v238, %v240
        %s242 = sld [smem:[#allocation6 + $0x1]]
        %v243 = vstv %s242
        %v244 = vadd.f32 %v241, %v243
        %v245 = vld [vmem:[%s190 + $0x1] sm:$0x1]
        %s246 = sld [smem:[#allocation2 + $0x81]]
        %v247 = vstv %s246
        %v248 = vmul.f32 %v245, %v247
        %v249 = vadd.f32 %v244, %v248
        %v250 = vld [vmem:[%s190 + $0x2] sm:$0x1]
        %s251 = sld [smem:[#allocation2 + $0x82]]
        %v252 = vstv %s251
        %v253 = vmul.f32 %v250, %v252
        %v254 = vadd.f32 %v249, %v253
        %v255 = vld [vmem:[%s190 + $0x3] sm:$0x1]
        %s256 = sld [smem:[#allocation2 + $0x83]]
        %v257 = vstv %s256
        %v258 = vmul.f32 %v255, %v257
        %v259 = vadd.f32 %v254, %v258
        %260 = vst [vmem:[%s214 + $0x1] sm:$0x1] %v259
        %v261 = vld [vmem:[%s190] sm:$0x1]
        %s262 = sld [smem:[#allocation2 + $0x100]]
        %v263 = vstv %s262
        %v264 = vmul.f32 %v261, %v263
        %s265 = sld [smem:[#allocation6 + $0x2]]
        %v266 = vstv %s265
        %v267 = vadd.f32 %v264, %v266
        %v268 = vld [vmem:[%s190 + $0x1] sm:$0x1]
        %s269 = sld [smem:[#allocation2 + $0x101]]
        %v270 = vstv %s269
        %v271 = vmul.f32 %v268, %v270
        %v272 = vadd.f32 %v267, %v271
        %v273 = vld [vmem:[%s190 + $0x2] sm:$0x1]
        %s274 = sld [smem:[#allocation2 + $0x102]]
        %v275 = vstv %s274
        %v276 = vmul.f32 %v273, %v275
        %v277 = vadd.f32 %v272, %v276
        %v278 = vld [vmem:[%s190 + $0x3] sm:$0x1]
        %s279 = sld [smem:[#allocation2 + $0x103]]
        %v280 = vstv %s279
        %v281 = vmul.f32 %v278, %v280
        %v282 = vadd.f32 %v277, %v281
        %283 = vst [vmem:[%s214 + $0x2] sm:$0x1] %v282
        %v284 = vld [vmem:[%s190] sm:$0x1]
        %s285 = sld [smem:[#allocation2 + $0x180]]
        %v286 = vstv %s285
        %v287 = vmul.f32 %v284, %v286
        %s288 = sld [smem:[#allocation6 + $0x3]]
        %v289 = vstv %s288
        %v290 = vadd.f32 %v287, %v289
        %v291 = vld [vmem:[%s190 + $0x1] sm:$0x1]
        %s292 = sld [smem:[#allocation2 + $0x181]]
        %v293 = vstv %s292
        %v294 = vmul.f32 %v291, %v293
        %v295 = vadd.f32 %v290, %v294
        %v296 = vld [vmem:[%s190 + $0x2] sm:$0x1]
        %s297 = sld [smem:[#allocation2 + $0x182]]
        %v298 = vstv %s297
        %v299 = vmul.f32 %v296, %v298
        %v300 = vadd.f32 %v295, %v299
        %v301 = vld [vmem:[%s190 + $0x3] sm:$0x1]
        %s302 = sld [smem:[#allocation2 + $0x183]]
        %v303 = vstv %s302
        %v304 = vmul.f32 %v301, %v303
        %v305 = vadd.f32 %v300, %v304
        %306 = vst [vmem:[%s214 + $0x3] sm:$0x1] %v305
        %v307 = vld [vmem:[%s190 + $0x4] sm:$0x1]
        %s308 = sld [smem:[#allocation2]]
        %v309 = vstv %s308
        %v310 = vmul.f32 %v307, %v309
        %s311 = sld [smem:[#allocation6]]
        %v312 = vstv %s311
        %v313 = vadd.f32 %v310, %v312
        %v314 = vld [vmem:[%s190 + $0x5] sm:$0x1]
        %s315 = sld [smem:[#allocation2 + $0x1]]
        %v316 = vstv %s315
        %v317 = vmul.f32 %v314, %v316
        %v318 = vadd.f32 %v313, %v317
        %v319 = vld [vmem:[%s190 + $0x6] sm:$0x1]
        %s320 = sld [smem:[#allocation2 + $0x2]]
        %v321 = vstv %s320
        %v322 = vmul.f32 %v319, %v321
        %v323 = vadd.f32 %v318, %v322
        %v324 = vld [vmem:[%s190 + $0x7] sm:$0x1]
        %s325 = sld [smem:[#allocation2 + $0x3]]
        %v326 = vstv %s325
        %v327 = vmul.f32 %v324, %v326
        %v328 = vadd.f32 %v323, %v327
        %329 = vst [vmem:[%s214 + $0x4] sm:$0x1] %v328
        %v330 = vld [vmem:[%s190 + $0x4] sm:$0x1]
        %s331 = sld [smem:[#allocation2 + $0x80]]
        %v332 = vstv %s331
        %v333 = vmul.f32 %v330, %v332
        %s334 = sld [smem:[#allocation6 + $0x1]]
        %v335 = vstv %s334
        %v336 = vadd.f32 %v333, %v335
        %v337 = vld [vmem:[%s190 + $0x5] sm:$0x1]
        %s338 = sld [smem:[#allocation2 + $0x81]]
        %v339 = vstv %s338
        %v340 = vmul.f32 %v337, %v339
        %v341 = vadd.f32 %v336, %v340
        %v342 = vld [vmem:[%s190 + $0x6] sm:$0x1]
        %s343 = sld [smem:[#allocation2 + $0x82]]
        %v344 = vstv %s343
        %v345 = vmul.f32 %v342, %v344
        %v346 = vadd.f32 %v341, %v345
        %v347 = vld [vmem:[%s190 + $0x7] sm:$0x1]
        %s348 = sld [smem:[#allocation2 + $0x83]]
        %v349 = vstv %s348
        %v350 = vmul.f32 %v347, %v349
        %v351 = vadd.f32 %v346, %v350
        %352 = vst [vmem:[%s214 + $0x5] sm:$0x1] %v351
        %v353 = vld [vmem:[%s190 + $0x4] sm:$0x1]
        %s354 = sld [smem:[#allocation2 + $0x100]]
        %v355 = vstv %s354
        %v356 = vmul.f32 %v353, %v355
        %s357 = sld [smem:[#allocation6 + $0x2]]
        %v358 = vstv %s357
        %v359 = vadd.f32 %v356, %v358
        %v360 = vld [vmem:[%s190 + $0x5] sm:$0x1]
        %s361 = sld [smem:[#allocation2 + $0x101]]
        %v362 = vstv %s361
        %v363 = vmul.f32 %v360, %v362
        %v364 = vadd.f32 %v359, %v363
        %v365 = vld [vmem:[%s190 + $0x6] sm:$0x1]
        %s366 = sld [smem:[#allocation2 + $0x102]]
        %v367 = vstv %s366
        %v368 = vmul.f32 %v365, %v367
        %v369 = vadd.f32 %v364, %v368
        %v370 = vld [vmem:[%s190 + $0x7] sm:$0x1]
        %s371 = sld [smem:[#allocation2 + $0x103]]
        %v372 = vstv %s371
        %v373 = vmul.f32 %v370, %v372
        %v374 = vadd.f32 %v369, %v373
        %375 = vst [vmem:[%s214 + $0x6] sm:$0x1] %v374
        %v376 = vld [vmem:[%s190 + $0x4] sm:$0x1]
        %s377 = sld [smem:[#allocation2 + $0x180]]
        %v378 = vstv %s377
        %v379 = vmul.f32 %v376, %v378
        %s380 = sld [smem:[#allocation6 + $0x3]]
        %v381 = vstv %s380
        %v382 = vadd.f32 %v379, %v381
        %v383 = vld [vmem:[%s190 + $0x5] sm:$0x1]
        %s384 = sld [smem:[#allocation2 + $0x181]]
        %v385 = vstv %s384
        %v386 = vmul.f32 %v383, %v385
        %v387 = vadd.f32 %v382, %v386
        %v388 = vld [vmem:[%s190 + $0x6] sm:$0x1]
        %s389 = sld [smem:[#allocation2 + $0x182]]
        %v390 = vstv %s389
        %v391 = vmul.f32 %v388, %v390
        %v392 = vadd.f32 %v387, %v391
        %v393 = vld [vmem:[%s190 + $0x7] sm:$0x1]
        %s394 = sld [smem:[#allocation2 + $0x183]]
        %v395 = vstv %s394
        %v396 = vmul.f32 %v393, %v395
        %v397 = vadd.f32 %v392, %v396
        %398 = vst [vmem:[%s214 + $0x7] sm:$0x1] %v397
        %s399 = sand.u32 %s98, 1
        %s400 = scalar_lea.sflag [#allocation4], %s399
        %s401 = sand.u32 %s98, 1
        %s402 = smul.addr %s401, 8
        %s403 = scalar_lea.vmem [#allocation9], %s402
        // Predicated region
        $region45: #{tpu_custom_call.1} parent=31 // pred_check
          %p404 = pneg %p108
        $region46: #{tpu_custom_call.1} parent=31 // pred_check_branch
          %406 = sbr.rel (%p404) target = $region48
        $region47: #{tpu_custom_call.1} parent=31 // pred_region
          %408 = vsyncadd %s400, 0
          %s409 = smul.addr %s22, 8
          %s410 = scalar_lea.hbm %s3, %s409
          %s412 = sshll.u32 %s403, 4
          %s413 = int_to_ptr.vmem [resolvable:$true] %s412
          %s414 = sshll.u32 %s410, 4
          %s415 = int_to_ptr.hbm [resolvable:$true] %s414
          %417 = dma.vmem_to_hbm [thread:$0]  %s413, 128, %s415, %s400
        $region48: #{tpu_custom_call.1} parent=31 // pred_fallthru
          _
      $region32: #{tpu_custom_call.1} parent=5 // pred_fallthru
        _
      %p418 = scmp.le.s32.totalorder 2, %s17
      // Predicated region
      $region49: #{tpu_custom_call.1} parent=5 // pred_check
        %p419 = pneg %p418
      $region50: #{tpu_custom_call.1} parent=5 // pred_check_branch
        %421 = sbr.rel (%p419) target = $region52
      $region51: #{tpu_custom_call.1} parent=5 // pred_region
        %s422 = ssub.s32 %s17, 2
        // Predicated region
        $region53: #{tpu_custom_call.1} parent=51 // pred_check
          %p423 = pneg %p114
        $region54: #{tpu_custom_call.1} parent=51 // pred_check_branch
          %425 = sbr.rel (%p423) target = $region56
        $region55: #{tpu_custom_call.1} parent=51 // pred_region
          %s426 = sand.u32 %s99, 1
          %s427 = scalar_lea.sflag [#allocation4], %s426
          %s428 = sand.u32 %s99, 1
          %s429 = smul.addr %s428, 8
          %s430 = scalar_lea.vmem [#allocation9], %s429
          %432 = dma.done %s427, 128
        $region56: #{tpu_custom_call.1} parent=51 // pred_fallthru
          _
      $region52: #{tpu_custom_call.1} parent=5 // pred_fallthru
        _
    $region6: #{tpu_custom_call.1} parent=1 // loop_footer
      %s21 = sadd.s32 1, %s17
    $region7: #{tpu_custom_call.1} parent=1 // loop_footer_branch
      %16 = sbr.rel target = $region3
    $region8: #{tpu_custom_call.1} parent=1 // loop_exit
      _
    %433 = vsyncpa [#allocation3], 1
    %s434 = scalar_lea.sflag [#allocation3], 1
    %435 = vsyncpa %s434, 1
    %436 = vsyncpa [#allocation4], 1
    %s437 = scalar_lea.sflag [#allocation4], 1
    %438 = vsyncpa %s437, 1
    %439 = vsyncpa [#allocation5], 1
    %s440 = scalar_lea.sflag [#allocation5], 1
    %441 = vsyncpa %s440, 1
    %442 = vsyncpa [#allocation7], 1

</llo_original>
